<compile_context>
chip_gen: v5e
topology: v5e:2x2
jax: 0.10.0
libtpu: 0.0.40
codegen_flags: <defaults>
</compile_context>

<pallas_src>
import jax
import jax.numpy as jnp
from jax.experimental import pallas as pl
from jax.experimental.pallas import tpu as pltpu


def worker_agent_kernel(x_ref, w1_ref, b1_ref, w2_ref, b2_ref, w3_ref, b3_ref, o_ref):
    # One batch tile per grid step; weights/biases are resident (constant index_map).
    x = x_ref[...]
    h = jnp.dot(x, w1_ref[...], preferred_element_type=jnp.float32) + b1_ref[...]
    h = jnp.maximum(h, 0.0)
    h = jnp.dot(h, w2_ref[...], preferred_element_type=jnp.float32) + b2_ref[...]
    h = jnp.maximum(h, 0.0)
    h = jnp.dot(h, w3_ref[...], preferred_element_type=jnp.float32) + b3_ref[...]
    o_ref[...] = jnp.tanh(h).astype(o_ref.dtype)


def worker_agent_forward(x, params, *, block_b=2048):
    """x: (B, 8) f32. Returns (B, 2) f32 = tanh(relu(relu(x@W1+b1)@W2+b2)@W3+b3)."""
    w1, b1, w2, b2, w3, b3 = params
    B, F = x.shape
    assert F == w1.shape[0] == 8
    H1, H2, OUT_W = w1.shape[1], w2.shape[1], w3.shape[1]  # 64, 32, 2

    # Batch tile: multiple of 8 (f32 sublane constraint), capped so the grid has >= 2
    # steps whenever B > 8 (feeds both v7x TensorCores; harmless on v5e/v6e).
    block_b = max(8, (block_b // 8) * 8)
    two_step_target = max(8, ((pl.cdiv(B, 2) + 7) // 8) * 8)
    Bt = min(block_b, two_step_target)
    grid = (pl.cdiv(B, Bt),)  # ragged final block handled by Pallas masking — no jnp.pad

    out = pl.pallas_call(
        worker_agent_kernel,
        out_shape=jax.ShapeDtypeStruct((B, OUT_W), jnp.float32),
        grid=grid,
        in_specs=[
            pl.BlockSpec((Bt, F), lambda i: (i, 0)),        # x tile  (streams per step)
            pl.BlockSpec((F, H1), lambda i: (0, 0)),        # w1      (resident)
            pl.BlockSpec((1, H1), lambda i: (0, 0)),        # b1      (resident)
            pl.BlockSpec((H1, H2), lambda i: (0, 0)),       # w2      (resident)
            pl.BlockSpec((1, H2), lambda i: (0, 0)),        # b2      (resident)
            pl.BlockSpec((H2, OUT_W), lambda i: (0, 0)),    # w3      (resident)
            pl.BlockSpec((1, OUT_W), lambda i: (0, 0)),     # b3      (resident)
        ],
        out_specs=pl.BlockSpec((Bt, OUT_W), lambda i: (i, 0)),  # true-width output tile
        compiler_params=pltpu.CompilerParams(dimension_semantics=("parallel",)),
    )(x, w1, b1, w2, b2, w3, b3)

    return out


def init_params(key):
    """Deterministic init matching PyTorch nn.Linear default:
    U(-1/sqrt(fan_in), 1/sqrt(fan_in)) for both weight and bias.
    Weights stored as (in_features, out_features) — transpose of PyTorch's (out, in)."""
    dims = [(8, 64), (64, 32), (32, 2)]
    params = []
    for i, (fan_in, fan_out) in enumerate(dims):
        kw, kb = jax.random.split(jax.random.fold_in(key, i))
        bound = 1.0 / (fan_in ** 0.5)
        w = jax.random.uniform(kw, (fan_in, fan_out), jnp.float32, -bound, bound)
        b = jax.random.uniform(kb, (1, fan_out), jnp.float32, -bound, bound)
        params.extend([w, b])
    return tuple(params)


def reference_forward(x, params):
    w1, b1, w2, b2, w3, b3 = params
    h = jnp.maximum(x @ w1 + b1, 0.0)
    h = jnp.maximum(h @ w2 + b2, 0.0)
    return jnp.tanh(h @ w3 + b3)


if __name__ == "__main__":
    key = jax.random.PRNGKey(0)
    params = init_params(key)

    # B=250 with block_b=128 -> Bt=128, 2 grid steps, ragged final block (122 valid rows):
    # exercises the masked-writeback path with no input padding copy.
    x = jax.random.normal(jax.random.fold_in(key, 100), (250, 8), jnp.float32)
    ref = reference_forward(x, params)

    out = jax.block_until_ready(worker_agent_forward(x, params, block_b=128))
    assert out.shape == (250, 2), out.shape
    assert jnp.allclose(out, ref, atol=1e-5, rtol=1e-5), "mismatch vs reference"

    # Tiny exact-tile batch (single grid step) with the default block_b.
    x_small = x[:8]
    out_small = jax.block_until_ready(worker_agent_forward(x_small, params))
    assert out_small.shape == (8, 2), out_small.shape
    assert jnp.allclose(out_small, ref[:8], atol=1e-5, rtol=1e-5), "mismatch (small batch)"

    print("KERNEL_OK")
</pallas_src>

<mosaic_0001>
module attributes {stable_mosaic.version = 11 : i64} {
  func.func @worker_agent_kernel(%arg0: i32, %arg1: memref<128x8xf32, #tpu.memory_space<vmem>>, %arg2: memref<8x64xf32, #tpu.memory_space<vmem>>, %arg3: memref<1x64xf32, #tpu.memory_space<vmem>>, %arg4: memref<64x32xf32, #tpu.memory_space<vmem>>, %arg5: memref<1x32xf32, #tpu.memory_space<vmem>>, %arg6: memref<32x2xf32, #tpu.memory_space<vmem>>, %arg7: memref<1x2xf32, #tpu.memory_space<vmem>>, %arg8: memref<128x2xf32, #tpu.memory_space<vmem>>) attributes {dimension_semantics = [#tpu.dimension_semantics<parallel>], iteration_bounds = array<i64: 2>, scalar_prefetch = 0 : i64, scratch_operands = 0 : i64, tpu.core_type = #tpu.core_type<tc>, window_params = [{transform_indices = @transform_0, window_bounds = array<i64: 128, 8>}, {pipeline_mode = #tpu.pipeline_mode<synchronous>, transform_indices = @transform_1, window_bounds = array<i64: 8, 64>}, {pipeline_mode = #tpu.pipeline_mode<synchronous>, transform_indices = @transform_2, window_bounds = array<i64: 1, 64>}, {pipeline_mode = #tpu.pipeline_mode<synchronous>, transform_indices = @transform_3, window_bounds = array<i64: 64, 32>}, {pipeline_mode = #tpu.pipeline_mode<synchronous>, transform_indices = @transform_4, window_bounds = array<i64: 1, 32>}, {pipeline_mode = #tpu.pipeline_mode<synchronous>, transform_indices = @transform_5, window_bounds = array<i64: 32, 2>}, {pipeline_mode = #tpu.pipeline_mode<synchronous>, transform_indices = @transform_6, window_bounds = array<i64: 1, 2>}, {transform_indices = @transform_7, window_bounds = array<i64: 128, 2>}]} {
    %c0 = arith.constant 0 : index
    %c0_0 = arith.constant 0 : index
    %0 = vector.load %arg1[%c0, %c0_0] : memref<128x8xf32, #tpu.memory_space<vmem>>, vector<128x8xf32>
    %c0_1 = arith.constant 0 : index
    %c0_2 = arith.constant 0 : index
    %1 = vector.load %arg2[%c0_1, %c0_2] : memref<8x64xf32, #tpu.memory_space<vmem>>, vector<8x64xf32>
    %cst = arith.constant dense<0.000000e+00> : vector<128x64xf32>
    %2 = tpu.matmul %0, %1, %cst {dimension_numbers = #tpu.dot_dimension_numbers<[1], [0], [0], [1], [0, 0, 1, 1], [], []>} : vector<128x8xf32>, vector<8x64xf32>, vector<128x64xf32> -> vector<128x64xf32>
    %c0_3 = arith.constant 0 : index
    %c0_4 = arith.constant 0 : index
    %3 = vector.load %arg3[%c0_3, %c0_4] : memref<1x64xf32, #tpu.memory_space<vmem>>, vector<1x64xf32>
    %4 = vector.broadcast %3 : vector<1x64xf32> to vector<128x64xf32>
    %5 = arith.addf %2, %4 : vector<128x64xf32>
    %cst_5 = arith.constant 0.000000e+00 : f32
    %6 = vector.broadcast %cst_5 : f32 to vector<128x64xf32>
    %7 = arith.maximumf %5, %6 : vector<128x64xf32>
    %c0_6 = arith.constant 0 : index
    %c0_7 = arith.constant 0 : index
    %8 = vector.load %arg4[%c0_6, %c0_7] : memref<64x32xf32, #tpu.memory_space<vmem>>, vector<64x32xf32>
    %cst_8 = arith.constant dense<0.000000e+00> : vector<128x32xf32>
    %9 = tpu.matmul %7, %8, %cst_8 {dimension_numbers = #tpu.dot_dimension_numbers<[1], [0], [0], [1], [0, 0, 1, 1], [], []>} : vector<128x64xf32>, vector<64x32xf32>, vector<128x32xf32> -> vector<128x32xf32>
    %c0_9 = arith.constant 0 : index
    %c0_10 = arith.constant 0 : index
    %10 = vector.load %arg5[%c0_9, %c0_10] : memref<1x32xf32, #tpu.memory_space<vmem>>, vector<1x32xf32>
    %11 = vector.broadcast %10 : vector<1x32xf32> to vector<128x32xf32>
    %12 = arith.addf %9, %11 : vector<128x32xf32>
    %cst_11 = arith.constant 0.000000e+00 : f32
    %13 = vector.broadcast %cst_11 : f32 to vector<128x32xf32>
    %14 = arith.maximumf %12, %13 : vector<128x32xf32>
    %c0_12 = arith.constant 0 : index
    %c0_13 = arith.constant 0 : index
    %15 = vector.load %arg6[%c0_12, %c0_13] : memref<32x2xf32, #tpu.memory_space<vmem>>, vector<32x2xf32>
    %cst_14 = arith.constant dense<0.000000e+00> : vector<128x2xf32>
    %16 = tpu.matmul %14, %15, %cst_14 {dimension_numbers = #tpu.dot_dimension_numbers<[1], [0], [0], [1], [0, 0, 1, 1], [], []>} : vector<128x32xf32>, vector<32x2xf32>, vector<128x2xf32> -> vector<128x2xf32>
    %c0_15 = arith.constant 0 : index
    %c0_16 = arith.constant 0 : index
    %17 = vector.load %arg7[%c0_15, %c0_16] : memref<1x2xf32, #tpu.memory_space<vmem>>, vector<1x2xf32>
    %18 = vector.broadcast %17 : vector<1x2xf32> to vector<128x2xf32>
    %19 = arith.addf %16, %18 : vector<128x2xf32>
    %20 = math.tanh %19 : vector<128x2xf32>
    %c0_17 = arith.constant 0 : index
    %c0_18 = arith.constant 0 : index
    %21 = vector.load %arg8[%c0_17, %c0_18] : memref<128x2xf32, #tpu.memory_space<vmem>>, vector<128x2xf32>
    tpu.vector_store %arg8[%c0_17, %c0_18], %20 {strides = array<i32>} : memref<128x2xf32, #tpu.memory_space<vmem>>, vector<128x2xf32>,
    return
  }
  func.func @transform_0(%arg0: i32) -> (i32, i32) {
    %c0_i32 = arith.constant 0 : i32
    %c0_i32_0 = arith.constant 0 : i32
    return %arg0, %c0_i32 : i32, i32
  }
  func.func @transform_1(%arg0: i32) -> (i32, i32) {
    %c0_i32 = arith.constant 0 : i32
    %c0_i32_0 = arith.constant 0 : i32
    %c0_i32_1 = arith.constant 0 : i32
    return %c0_i32, %c0_i32_0 : i32, i32
  }
  func.func @transform_2(%arg0: i32) -> (i32, i32) {
    %c0_i32 = arith.constant 0 : i32
    %c0_i32_0 = arith.constant 0 : i32
    %c0_i32_1 = arith.constant 0 : i32
    return %c0_i32, %c0_i32_0 : i32, i32
  }
  func.func @transform_3(%arg0: i32) -> (i32, i32) {
    %c0_i32 = arith.constant 0 : i32
    %c0_i32_0 = arith.constant 0 : i32
    %c0_i32_1 = arith.constant 0 : i32
    return %c0_i32, %c0_i32_0 : i32, i32
  }
  func.func @transform_4(%arg0: i32) -> (i32, i32) {
    %c0_i32 = arith.constant 0 : i32
    %c0_i32_0 = arith.constant 0 : i32
    %c0_i32_1 = arith.constant 0 : i32
    return %c0_i32, %c0_i32_0 : i32, i32
  }
  func.func @transform_5(%arg0: i32) -> (i32, i32) {
    %c0_i32 = arith.constant 0 : i32
    %c0_i32_0 = arith.constant 0 : i32
    %c0_i32_1 = arith.constant 0 : i32
    return %c0_i32, %c0_i32_0 : i32, i32
  }
  func.func @transform_6(%arg0: i32) -> (i32, i32) {
    %c0_i32 = arith.constant 0 : i32
    %c0_i32_0 = arith.constant 0 : i32
    %c0_i32_1 = arith.constant 0 : i32
    return %c0_i32, %c0_i32_0 : i32, i32
  }
  func.func @transform_7(%arg0: i32) -> (i32, i32) {
    %c0_i32 = arith.constant 0 : i32
    %c0_i32_0 = arith.constant 0 : i32
    return %arg0, %c0_i32 : i32, i32
  }
}

</mosaic_0001>

<llo_original>
// kernel: tpu_custom_call.1
$region0: #{tpu_custom_call.1}
  #allocation0 [shape = 'u32[]', space=smem, size = 0x4, offset = 0x4, fixed_abs, tag = 'smem constant byte address 0x4 - core index']
  #allocation1 [shape = 'u32[72,128]{1,0:T(1,128)}', space=vmem, size = 0x9000, scoped, tag = 'internal scratch']
  %s0 = inlined_call_operand.vmem [shape: f32[250,8], index: 0, kind: input, shape index: {}]
  %s1 = inlined_call_operand.vmem [shape: f32[8,64], index: 1, kind: input, shape index: {}]
  %s2 = inlined_call_operand.vmem [shape: f32[1,64], index: 2, kind: input, shape index: {}]
  %s3 = inlined_call_operand.vmem [shape: f32[64,32], index: 3, kind: input, shape index: {}]
  %s4 = inlined_call_operand.vmem [shape: f32[1,32], index: 4, kind: input, shape index: {}]
  %s5 = inlined_call_operand.vmem [shape: f32[32,2], index: 5, kind: input, shape index: {}]
  %s6 = inlined_call_operand.vmem [shape: f32[1,2], index: 6, kind: input, shape index: {}]
  %s7 = inlined_call_operand.vmem [shape: f32[250,2], index: 7, kind: output, shape index: {}]
  %s8 = sld [smem:[#allocation0]]
  $region61: #{tpu_custom_call.1} parent=0
    _
  %s10 = ssub.s32 1, %s8
  %s11 = scalar_select 0, %s10, %s8
  loop: start=0, step=1, limit=4
  $region2: #{tpu_custom_call.1} parent=0 // loop_pre_header
    _
  $region3: #{tpu_custom_call.1} parent=0 // loop_header
    %s13 = sphi 0, %s17
    %p14 = scmp.ge.s32.totalorder %s13, 4
    %s23 = sphi 0, %s25
    %s26 = sphi 0, %s23
    %s27 = sphi 0, %s26
    %s43 = sphi 0, %s27
    %s47 = sphi 0, %s47
    %s49 = sphi 0, %s47
    %s50 = sphi 0, %s49
    %s64 = sphi 0, %s50
    %s68 = sphi 0, %s68
    %s70 = sphi 0, %s68
    %s71 = sphi 0, %s70
    %s85 = sphi 0, %s71
    %s89 = sphi 0, %s89
    %s91 = sphi 0, %s89
    %s92 = sphi 0, %s91
    %s106 = sphi 0, %s92
    %s110 = sphi 0, %s110
    %s112 = sphi 0, %s110
    %s113 = sphi 0, %s112
    %s127 = sphi 0, %s113
    %s131 = sphi 0, %s131
    %s133 = sphi 0, %s131
    %s134 = sphi 0, %s133
    %s148 = sphi 0, %s134
    %s152 = sphi 0, %s152
    %s154 = sphi 0, %s152
    %s155 = sphi 0, %s154
    %s169 = sphi 0, %s155
    %s175 = sphi 0, %s177
    %s178 = sphi 0, %s175
    %s179 = sphi 0, %s178
    %s195 = sphi 0, %s179
  $region4: #{tpu_custom_call.1} parent=0 // loop_header_branch
    %16 = sbr.rel (%p14) target = $region8
  $region5: #{tpu_custom_call.1} parent=0 // loop_body
    %s18 = ssub.s32 %s13, 1
    %s19 = ssub.s32 %s13, 2
    %s20 = sadd.s32 %s13, 1
    %s21 = ssub.s32 %s13, %s20
    %p22 = scmp.eq.s32.totalorder %s21, 0
    %s24 = sadd.s32 %s23, 1
    %s25 = scalar_select %p22, %s23, %s24
    %p28 = pneg %p22
    %p29 = scmp.eq.s32.totalorder %s13, 1
    %p30 = por %p28, %p29
    %p31 = scmp.ne.s32.totalorder %s23, %s26
    %p32 = scmp.eq.s32.totalorder %s13, 0
    %p33 = por %p31, %p32
    %p34 = scmp.ne.s32.totalorder %s23, %s26
    %p35 = scmp.eq.s32.totalorder %s18, 1
    %p36 = por %p34, %p35
    %p37 = scmp.ne.s32.totalorder %s26, %s27
    %p38 = scmp.eq.s32.totalorder %s18, 0
    %p39 = por %p37, %p38
    %p40 = scmp.ne.s32.totalorder %s26, %s27
    %p41 = scmp.eq.s32.totalorder %s19, 1
    %p42 = por %p40, %p41
    %p44 = scmp.ne.s32.totalorder %s27, %s43
    %p45 = scmp.eq.s32.totalorder %s19, 0
    %p46 = por %p44, %p45
    %s48 = sadd.s32 %s47, 1
    %p51 = scmp.eq.s32.totalorder %s13, 1
    %p52 = scmp.ne.s32.totalorder %s47, %s49
    %p53 = scmp.eq.s32.totalorder %s13, 0
    %p54 = por %p52, %p53
    %p55 = scmp.ne.s32.totalorder %s47, %s49
    %p56 = scmp.eq.s32.totalorder %s18, 1
    %p57 = por %p55, %p56
    %p58 = scmp.ne.s32.totalorder %s49, %s50
    %p59 = scmp.eq.s32.totalorder %s18, 0
    %p60 = por %p58, %p59
    %p61 = scmp.ne.s32.totalorder %s49, %s50
    %p62 = scmp.eq.s32.totalorder %s19, 1
    %p63 = por %p61, %p62
    %p65 = scmp.ne.s32.totalorder %s50, %s64
    %p66 = scmp.eq.s32.totalorder %s19, 0
    %p67 = por %p65, %p66
    %s69 = sadd.s32 %s68, 1
    %p72 = scmp.eq.s32.totalorder %s13, 1
    %p73 = scmp.ne.s32.totalorder %s68, %s70
    %p74 = scmp.eq.s32.totalorder %s13, 0
    %p75 = por %p73, %p74
    %p76 = scmp.ne.s32.totalorder %s68, %s70
    %p77 = scmp.eq.s32.totalorder %s18, 1
    %p78 = por %p76, %p77
    %p79 = scmp.ne.s32.totalorder %s70, %s71
    %p80 = scmp.eq.s32.totalorder %s18, 0
    %p81 = por %p79, %p80
    %p82 = scmp.ne.s32.totalorder %s70, %s71
    %p83 = scmp.eq.s32.totalorder %s19, 1
    %p84 = por %p82, %p83
    %p86 = scmp.ne.s32.totalorder %s71, %s85
    %p87 = scmp.eq.s32.totalorder %s19, 0
    %p88 = por %p86, %p87
    %s90 = sadd.s32 %s89, 1
    %p93 = scmp.eq.s32.totalorder %s13, 1
    %p94 = scmp.ne.s32.totalorder %s89, %s91
    %p95 = scmp.eq.s32.totalorder %s13, 0
    %p96 = por %p94, %p95
    %p97 = scmp.ne.s32.totalorder %s89, %s91
    %p98 = scmp.eq.s32.totalorder %s18, 1
    %p99 = por %p97, %p98
    %p100 = scmp.ne.s32.totalorder %s91, %s92
    %p101 = scmp.eq.s32.totalorder %s18, 0
    %p102 = por %p100, %p101
    %p103 = scmp.ne.s32.totalorder %s91, %s92
    %p104 = scmp.eq.s32.totalorder %s19, 1
    %p105 = por %p103, %p104
    %p107 = scmp.ne.s32.totalorder %s92, %s106
    %p108 = scmp.eq.s32.totalorder %s19, 0
    %p109 = por %p107, %p108
    %s111 = sadd.s32 %s110, 1
    %p114 = scmp.eq.s32.totalorder %s13, 1
    %p115 = scmp.ne.s32.totalorder %s110, %s112
    %p116 = scmp.eq.s32.totalorder %s13, 0
    %p117 = por %p115, %p116
    %p118 = scmp.ne.s32.totalorder %s110, %s112
    %p119 = scmp.eq.s32.totalorder %s18, 1
    %p120 = por %p118, %p119
    %p121 = scmp.ne.s32.totalorder %s112, %s113
    %p122 = scmp.eq.s32.totalorder %s18, 0
    %p123 = por %p121, %p122
    %p124 = scmp.ne.s32.totalorder %s112, %s113
    %p125 = scmp.eq.s32.totalorder %s19, 1
    %p126 = por %p124, %p125
    %p128 = scmp.ne.s32.totalorder %s113, %s127
    %p129 = scmp.eq.s32.totalorder %s19, 0
    %p130 = por %p128, %p129
    %s132 = sadd.s32 %s131, 1
    %p135 = scmp.eq.s32.totalorder %s13, 1
    %p136 = scmp.ne.s32.totalorder %s131, %s133
    %p137 = scmp.eq.s32.totalorder %s13, 0
    %p138 = por %p136, %p137
    %p139 = scmp.ne.s32.totalorder %s131, %s133
    %p140 = scmp.eq.s32.totalorder %s18, 1
    %p141 = por %p139, %p140
    %p142 = scmp.ne.s32.totalorder %s133, %s134
    %p143 = scmp.eq.s32.totalorder %s18, 0
    %p144 = por %p142, %p143
    %p145 = scmp.ne.s32.totalorder %s133, %s134
    %p146 = scmp.eq.s32.totalorder %s19, 1
    %p147 = por %p145, %p146
    %p149 = scmp.ne.s32.totalorder %s134, %s148
    %p150 = scmp.eq.s32.totalorder %s19, 0
    %p151 = por %p149, %p150
    %s153 = sadd.s32 %s152, 1
    %p156 = scmp.eq.s32.totalorder %s13, 1
    %p157 = scmp.ne.s32.totalorder %s152, %s154
    %p158 = scmp.eq.s32.totalorder %s13, 0
    %p159 = por %p157, %p158
    %p160 = scmp.ne.s32.totalorder %s152, %s154
    %p161 = scmp.eq.s32.totalorder %s18, 1
    %p162 = por %p160, %p161
    %p163 = scmp.ne.s32.totalorder %s154, %s155
    %p164 = scmp.eq.s32.totalorder %s18, 0
    %p165 = por %p163, %p164
    %p166 = scmp.ne.s32.totalorder %s154, %s155
    %p167 = scmp.eq.s32.totalorder %s19, 1
    %p168 = por %p166, %p167
    %p170 = scmp.ne.s32.totalorder %s155, %s169
    %p171 = scmp.eq.s32.totalorder %s19, 0
    %p172 = por %p170, %p171
    %s173 = ssub.s32 %s13, %s20
    %p174 = scmp.eq.s32.totalorder %s173, 0
    %s176 = sadd.s32 %s175, 1
    %s177 = scalar_select %p174, %s175, %s176
    %p180 = pneg %p174
    %p181 = scmp.eq.s32.totalorder %s13, 1
    %p182 = por %p180, %p181
    %p183 = scmp.ne.s32.totalorder %s175, %s178
    %p184 = scmp.eq.s32.totalorder %s13, 0
    %p185 = por %p183, %p184
    %p186 = scmp.ne.s32.totalorder %s175, %s178
    %p187 = scmp.eq.s32.totalorder %s18, 1
    %p188 = por %p186, %p187
    %p189 = scmp.ne.s32.totalorder %s178, %s179
    %p190 = scmp.eq.s32.totalorder %s18, 0
    %p191 = por %p189, %p190
    %p192 = scmp.ne.s32.totalorder %s178, %s179
    %p193 = scmp.eq.s32.totalorder %s19, 1
    %p194 = por %p192, %p193
    %p196 = scmp.ne.s32.totalorder %s179, %s195
    %p197 = scmp.eq.s32.totalorder %s19, 0
    %p198 = por %p196, %p197
    %p199 = scmp.le.s32.totalorder 1, %s13
    %p200 = scmp.lt.s32.totalorder %s13, 3
    %p201 = pnand %p199, %p200
    %p202 = pneg %p201
    // Predicated region
    $region9: #{tpu_custom_call.1} parent=5 // pred_check
      _
    $region10: #{tpu_custom_call.1} parent=5 // pred_check_branch
      %204 = sbr.rel (%p201) target = $region12
    $region11: #{tpu_custom_call.1} parent=5 // pred_region
      %s205 = ssub.s32 %s13, 1
      // Predicated region
      $region13: #{tpu_custom_call.1} parent=11 // pred_check
        %p206 = pneg %p60
      $region14: #{tpu_custom_call.1} parent=11 // pred_check_branch
        %208 = sbr.rel (%p206) target = $region16
      $region15: #{tpu_custom_call.1} parent=11 // pred_region
        _
      $region16: #{tpu_custom_call.1} parent=11 // pred_fallthru
        _
      // Predicated region
      $region17: #{tpu_custom_call.1} parent=11 // pred_check
        %p209 = pneg %p81
      $region18: #{tpu_custom_call.1} parent=11 // pred_check_branch
        %211 = sbr.rel (%p209) target = $region20
      $region19: #{tpu_custom_call.1} parent=11 // pred_region
        _
      $region20: #{tpu_custom_call.1} parent=11 // pred_fallthru
        _
      // Predicated region
      $region21: #{tpu_custom_call.1} parent=11 // pred_check
        %p212 = pneg %p102
      $region22: #{tpu_custom_call.1} parent=11 // pred_check_branch
        %214 = sbr.rel (%p212) target = $region24
      $region23: #{tpu_custom_call.1} parent=11 // pred_region
        _
      $region24: #{tpu_custom_call.1} parent=11 // pred_fallthru
        _
      // Predicated region
      $region25: #{tpu_custom_call.1} parent=11 // pred_check
        %p215 = pneg %p123
      $region26: #{tpu_custom_call.1} parent=11 // pred_check_branch
        %217 = sbr.rel (%p215) target = $region28
      $region27: #{tpu_custom_call.1} parent=11 // pred_region
        _
      $region28: #{tpu_custom_call.1} parent=11 // pred_fallthru
        _
      // Predicated region
      $region29: #{tpu_custom_call.1} parent=11 // pred_check
        %p218 = pneg %p144
      $region30: #{tpu_custom_call.1} parent=11 // pred_check_branch
        %220 = sbr.rel (%p218) target = $region32
      $region31: #{tpu_custom_call.1} parent=11 // pred_region
        _
      $region32: #{tpu_custom_call.1} parent=11 // pred_fallthru
        _
      // Predicated region
      $region33: #{tpu_custom_call.1} parent=11 // pred_check
        %p221 = pneg %p165
      $region34: #{tpu_custom_call.1} parent=11 // pred_check_branch
        %223 = sbr.rel (%p221) target = $region36
      $region35: #{tpu_custom_call.1} parent=11 // pred_region
        _
      $region36: #{tpu_custom_call.1} parent=11 // pred_fallthru
        _
    $region12: #{tpu_custom_call.1} parent=5 // pred_fallthru
      _
    %p224 = scmp.lt.s32.totalorder %s13, 2
    // Predicated region
    $region37: #{tpu_custom_call.1} parent=5 // pred_check
      %p225 = pneg %p224
    $region38: #{tpu_custom_call.1} parent=5 // pred_check_branch
      %227 = sbr.rel (%p225) target = $region40
    $region39: #{tpu_custom_call.1} parent=5 // pred_region
      // Predicated region
      $region41: #{tpu_custom_call.1} parent=39 // pred_check
        %p228 = pneg %p33
      $region42: #{tpu_custom_call.1} parent=39 // pred_check_branch
        %230 = sbr.rel (%p228) target = $region44
      $region43: #{tpu_custom_call.1} parent=39 // pred_region
        %s231 = smul.u32 16, %s13
        %p232 = scmp.lt.s32.totalorder %s231, 31
        %s233 = scalar_select %p232, %s231, 31
        %s234 = smul.addr %s233, 8
        %s235 = scalar_lea.vmem %s0, %s234
        %s236 = smul.u32 16, %s13
      $region44: #{tpu_custom_call.1} parent=39 // pred_fallthru
        _
    $region40: #{tpu_custom_call.1} parent=5 // pred_fallthru
      _
    %p237 = scmp.le.s32.totalorder 1, %s13
    %p238 = scmp.lt.s32.totalorder %s13, 3
    %p239 = pnand %p237, %p238
    %p240 = pneg %p239
    // Predicated region
    $region45: #{tpu_custom_call.1} parent=5 // pred_check
      _
    $region46: #{tpu_custom_call.1} parent=5 // pred_check_branch
      %242 = sbr.rel (%p239) target = $region48
    $region47: #{tpu_custom_call.1} parent=5 // pred_region
      %s243 = ssub.s32 %s13, 1
      %s244 = smul.u32 16, %s18
      %p245 = scmp.lt.s32.totalorder %s244, 31
      %s246 = scalar_select %p245, %s244, 31
      %s247 = smul.addr %s246, 8
      %s248 = scalar_lea.vmem %s0, %s247
      %p249 = pneg %p39
      %p250 = pneg %p36
      %p251 = pneg %p60
      %p252 = pneg %p57
      %p253 = pneg %p81
      %p254 = pneg %p78
      %p255 = pneg %p102
      %p256 = pneg %p99
      %p257 = pneg %p123
      %p258 = pneg %p120
      %p259 = pneg %p144
      %p260 = pneg %p141
      %p261 = pneg %p165
      %p262 = pneg %p162
      %p263 = pneg %p191
      %p264 = pneg %p188
      %s265 = smul.u32 16, %s18
      %p266 = scmp.lt.s32.totalorder %s265, 31
      %s267 = scalar_select %p266, %s265, 31
      %s268 = smul.addr %s267, 8
      %s269 = scalar_lea.vmem %s7, %s268
      %s270 = smul.u32 16, %s18
      %p271 = scmp.lt.s32.totalorder %s270, 31
      %s272 = scalar_select %p271, %s270, 31
      %s273 = smul.addr %s272, 8
      %s274 = scalar_lea.vmem %s0, %s273
      %s275 = smul.u32 16, %s18
      %s276 = smul.u32 16, %s18
      %p277 = scmp.lt.s32.totalorder %s276, 31
      %s278 = scalar_select %p277, %s276, 31
      %s279 = smul.addr %s278, 8
      %s280 = scalar_lea.vmem %s7, %s279
      %s281 = smul.u32 16, %s18
      %v282 = vld [vmem:[%s274] sm:$0xff]
      %v283 = vld [vmem:[%s274 + $0x8] sm:$0xff]
      %v284 = vld [vmem:[%s274 + $0x10] sm:$0xff]
      %v285 = vld [vmem:[%s274 + $0x18] sm:$0xff]
      %v286 = vld [vmem:[%s274 + $0x20] sm:$0xff]
      %v287 = vld [vmem:[%s274 + $0x28] sm:$0xff]
      %v288 = vld [vmem:[%s274 + $0x30] sm:$0xff]
      %v289 = vld [vmem:[%s274 + $0x38] sm:$0xff]
      %v290 = vld [vmem:[%s274 + $0x40] sm:$0xff]
      %v291 = vld [vmem:[%s274 + $0x48] sm:$0xff]
      %v292 = vld [vmem:[%s274 + $0x50] sm:$0xff]
      %v293 = vld [vmem:[%s274 + $0x58] sm:$0xff]
      %v294 = vld [vmem:[%s274 + $0x60] sm:$0xff]
      %v295 = vld [vmem:[%s274 + $0x68] sm:$0xff]
      %v296 = vld [vmem:[%s274 + $0x70] sm:$0xff]
      %v297 = vld [vmem:[%s274 + $0x78] sm:$0xff]
      %v298 = vld [vmem:[%s1] sm:$0xff]
      %v299 = vld [vmem:[%s2] sm:$0x1]
      %v301 = vperm.slane %v299, 0
      %vm303 = vcmask 64512
      %v305 = vsel %vm303, %v282, 0
      %v308 = vsel %vm303, %v283, 0
      %v311 = vsel %vm303, %v284, 0
      %v314 = vsel %vm303, %v285, 0
      %v317 = vsel %vm303, %v286, 0
      %v320 = vsel %vm303, %v287, 0
      %v323 = vsel %vm303, %v288, 0
      %v326 = vsel %vm303, %v289, 0
      %v329 = vsel %vm303, %v290, 0
      %v332 = vsel %vm303, %v291, 0
      %v335 = vsel %vm303, %v292, 0
      %v338 = vsel %vm303, %v293, 0
      %v341 = vsel %vm303, %v294, 0
      %v344 = vsel %vm303, %v295, 0
      %v347 = vsel %vm303, %v296, 0
      %v350 = vsel %vm303, %v297, 0
      %352 = vmatpush.msra.mxu0 0.0
      %353 = vmatpush.msra.mxu0 0.0
      %354 = vmatpush.msra.mxu0 0.0
      %355 = vmatpush.msra.mxu0 0.0
      %356 = vmatpush.msra.mxu0 0.0
      %357 = vmatpush.msra.mxu0 0.0
      %358 = vmatpush.msra.mxu0 0.0
      %359 = vmatpush.msra.mxu0 0.0
      %360 = vmatpush.msra.mxu0 0.0
      %361 = vmatpush.msra.mxu0 0.0
      %362 = vmatpush.msra.mxu0 0.0
      %363 = vmatpush.msra.mxu0 0.0
      %364 = vmatpush.msra.mxu0 0.0
      %365 = vmatpush.msra.mxu0 0.0
      %366 = vmatpush.msra.mxu0 0.0
      %367 = vmatpush.msra.mxu0 %v298
      %368 = vmatmul.f32.gmra.mxu0 %v305
      %v369 = vpop.f32.mrf.mxu0
      %v370 = vadd.f32 %v301, %v369
      %371 = vmatmul.f32.gmra.mxu0 %v308
      %v372 = vpop.f32.mrf.mxu0
      %v373 = vadd.f32 %v301, %v372
      %374 = vmatmul.f32.gmra.mxu0 %v311
      %v375 = vpop.f32.mrf.mxu0
      %v376 = vadd.f32 %v301, %v375
      %377 = vmatmul.f32.gmra.mxu0 %v314
      %v378 = vpop.f32.mrf.mxu0
      %v379 = vadd.f32 %v301, %v378
      %380 = vmatmul.f32.gmra.mxu0 %v317
      %v381 = vpop.f32.mrf.mxu0
      %v382 = vadd.f32 %v301, %v381
      %383 = vmatmul.f32.gmra.mxu0 %v320
      %v384 = vpop.f32.mrf.mxu0
      %v385 = vadd.f32 %v301, %v384
      %386 = vmatmul.f32.gmra.mxu0 %v323
      %v387 = vpop.f32.mrf.mxu0
      %v388 = vadd.f32 %v301, %v387
      %389 = vmatmul.f32.gmra.mxu0 %v326
      %v390 = vpop.f32.mrf.mxu0
      %v391 = vadd.f32 %v301, %v390
      %392 = vmatmul.f32.gmra.mxu0 %v329
      %v393 = vpop.f32.mrf.mxu0
      %v394 = vadd.f32 %v301, %v393
      %395 = vmatmul.f32.gmra.mxu0 %v332
      %v396 = vpop.f32.mrf.mxu0
      %v397 = vadd.f32 %v301, %v396
      %398 = vmatmul.f32.gmra.mxu0 %v335
      %v399 = vpop.f32.mrf.mxu0
      %v400 = vadd.f32 %v301, %v399
      %401 = vmatmul.f32.gmra.mxu0 %v338
      %v402 = vpop.f32.mrf.mxu0
      %v403 = vadd.f32 %v301, %v402
      %404 = vmatmul.f32.gmra.mxu0 %v341
      %v405 = vpop.f32.mrf.mxu0
      %v406 = vadd.f32 %v301, %v405
      %407 = vmatmul.f32.gmra.mxu0 %v344
      %v408 = vpop.f32.mrf.mxu0
      %v409 = vadd.f32 %v301, %v408
      %410 = vmatmul.f32.gmra.mxu0 %v347
      %v411 = vpop.f32.mrf.mxu0
      %v412 = vadd.f32 %v301, %v411
      %413 = vmatmul.f32.gmra.mxu0 %v350
      %v414 = vpop.f32.mrf.mxu0
      %v415 = vadd.f32 %v301, %v414
      %416 = vdwg.mxu0
      %v417 = vmax.f32 %v370, 0.0
      %v418 = vmax.f32 %v373, 0.0
      %v419 = vmax.f32 %v376, 0.0
      %v420 = vmax.f32 %v379, 0.0
      %v421 = vmax.f32 %v382, 0.0
      %v422 = vmax.f32 %v385, 0.0
      %v423 = vmax.f32 %v388, 0.0
      %v424 = vmax.f32 %v391, 0.0
      %v425 = vmax.f32 %v394, 0.0
      %v426 = vmax.f32 %v397, 0.0
      %v427 = vmax.f32 %v400, 0.0
      %v428 = vmax.f32 %v403, 0.0
      %v429 = vmax.f32 %v406, 0.0
      %v430 = vmax.f32 %v409, 0.0
      %v431 = vmax.f32 %v412, 0.0
      %v432 = vmax.f32 %v415, 0.0
      %v433 = vld [vmem:[%s3] sm:$0xff]
      %v434 = vld [vmem:[%s3 + $0x8] sm:$0xff]
      %v435 = vld [vmem:[%s3 + $0x10] sm:$0xff]
      %v436 = vld [vmem:[%s3 + $0x18] sm:$0xff]
      %v437 = vld [vmem:[%s3 + $0x20] sm:$0xff]
      %v438 = vld [vmem:[%s3 + $0x28] sm:$0xff]
      %v439 = vld [vmem:[%s3 + $0x30] sm:$0xff]
      %v440 = vld [vmem:[%s3 + $0x38] sm:$0xff]
      %v441 = vld [vmem:[%s4] sm:$0x1]
      %v443 = vperm.slane %v441, 0
      %vm445 = vcmask 523264
      %v447 = vsel %vm445, %v417, 0
      %v450 = vsel %vm445, %v418, 0
      %v453 = vsel %vm445, %v419, 0
      %v456 = vsel %vm445, %v420, 0
      %v459 = vsel %vm445, %v421, 0
      %v462 = vsel %vm445, %v422, 0
      %v465 = vsel %vm445, %v423, 0
      %v468 = vsel %vm445, %v424, 0
      %v471 = vsel %vm445, %v425, 0
      %v474 = vsel %vm445, %v426, 0
      %v477 = vsel %vm445, %v427, 0
      %v480 = vsel %vm445, %v428, 0
      %v483 = vsel %vm445, %v429, 0
      %v486 = vsel %vm445, %v430, 0
      %v489 = vsel %vm445, %v431, 0
      %v492 = vsel %vm445, %v432, 0
      %494 = vmatpush.msra.mxu0 0.0
      %495 = vmatpush.msra.mxu0 0.0
      %496 = vmatpush.msra.mxu0 0.0
      %497 = vmatpush.msra.mxu0 0.0
      %498 = vmatpush.msra.mxu0 0.0
      %499 = vmatpush.msra.mxu0 0.0
      %500 = vmatpush.msra.mxu0 0.0
      %501 = vmatpush.msra.mxu0 0.0
      %502 = vmatpush.msra.mxu0 %v440
      %503 = vmatpush.msra.mxu0 %v439
      %504 = vmatpush.msra.mxu0 %v438
      %505 = vmatpush.msra.mxu0 %v437
      %506 = vmatpush.msra.mxu0 %v436
      %507 = vmatpush.msra.mxu0 %v435
      %508 = vmatpush.msra.mxu0 %v434
      %509 = vmatpush.msra.mxu0 %v433
      %510 = vmatmul.f32.gmra.mxu0 %v447
      %v511 = vpop.f32.mrf.mxu0
      %v512 = vadd.f32 %v443, %v511
      %513 = vmatmul.f32.gmra.mxu0 %v450
      %v514 = vpop.f32.mrf.mxu0
      %v515 = vadd.f32 %v443, %v514
      %516 = vmatmul.f32.gmra.mxu0 %v453
      %v517 = vpop.f32.mrf.mxu0
      %v518 = vadd.f32 %v443, %v517
      %519 = vmatmul.f32.gmra.mxu0 %v456
      %v520 = vpop.f32.mrf.mxu0
      %v521 = vadd.f32 %v443, %v520
      %522 = vmatmul.f32.gmra.mxu0 %v459
      %v523 = vpop.f32.mrf.mxu0
      %v524 = vadd.f32 %v443, %v523
      %525 = vmatmul.f32.gmra.mxu0 %v462
      %v526 = vpop.f32.mrf.mxu0
      %v527 = vadd.f32 %v443, %v526
      %528 = vmatmul.f32.gmra.mxu0 %v465
      %v529 = vpop.f32.mrf.mxu0
      %v530 = vadd.f32 %v443, %v529
      %531 = vmatmul.f32.gmra.mxu0 %v468
      %v532 = vpop.f32.mrf.mxu0
      %v533 = vadd.f32 %v443, %v532
      %534 = vmatmul.f32.gmra.mxu0 %v471
      %v535 = vpop.f32.mrf.mxu0
      %v536 = vadd.f32 %v443, %v535
      %537 = vmatmul.f32.gmra.mxu0 %v474
      %v538 = vpop.f32.mrf.mxu0
      %v539 = vadd.f32 %v443, %v538
      %540 = vmatmul.f32.gmra.mxu0 %v477
      %v541 = vpop.f32.mrf.mxu0
      %v542 = vadd.f32 %v443, %v541
      %543 = vmatmul.f32.gmra.mxu0 %v480
      %v544 = vpop.f32.mrf.mxu0
      %v545 = vadd.f32 %v443, %v544
      %546 = vmatmul.f32.gmra.mxu0 %v483
      %v547 = vpop.f32.mrf.mxu0
      %v548 = vadd.f32 %v443, %v547
      %549 = vmatmul.f32.gmra.mxu0 %v486
      %v550 = vpop.f32.mrf.mxu0
      %v551 = vadd.f32 %v443, %v550
      %552 = vmatmul.f32.gmra.mxu0 %v489
      %v553 = vpop.f32.mrf.mxu0
      %v554 = vadd.f32 %v443, %v553
      %555 = vmatmul.f32.gmra.mxu0 %v492
      %v556 = vpop.f32.mrf.mxu0
      %v557 = vadd.f32 %v443, %v556
      %558 = vdwg.mxu0
      %v559 = vmax.f32 %v512, 0.0
      %v560 = vmax.f32 %v515, 0.0
      %v561 = vmax.f32 %v518, 0.0
      %v562 = vmax.f32 %v521, 0.0
      %v563 = vmax.f32 %v524, 0.0
      %v564 = vmax.f32 %v527, 0.0
      %v565 = vmax.f32 %v530, 0.0
      %v566 = vmax.f32 %v533, 0.0
      %v567 = vmax.f32 %v536, 0.0
      %v568 = vmax.f32 %v539, 0.0
      %v569 = vmax.f32 %v542, 0.0
      %v570 = vmax.f32 %v545, 0.0
      %v571 = vmax.f32 %v548, 0.0
      %v572 = vmax.f32 %v551, 0.0
      %v573 = vmax.f32 %v554, 0.0
      %v574 = vmax.f32 %v557, 0.0
      %v575 = vld [vmem:[%s5] sm:$0xff]
      %v576 = vld [vmem:[%s5 + $0x8] sm:$0xff]
      %v577 = vld [vmem:[%s5 + $0x10] sm:$0xff]
      %v578 = vld [vmem:[%s5 + $0x18] sm:$0xff]
      %v579 = vld [vmem:[%s6] sm:$0x1]
      %v581 = vperm.slane %v579, 0
      %vm583 = vcmask 261120
      %v585 = vsel %vm583, %v559, 0
      %v588 = vsel %vm583, %v560, 0
      %v591 = vsel %vm583, %v561, 0
      %v594 = vsel %vm583, %v562, 0
      %v597 = vsel %vm583, %v563, 0
      %v600 = vsel %vm583, %v564, 0
      %v603 = vsel %vm583, %v565, 0
      %v606 = vsel %vm583, %v566, 0
      %v609 = vsel %vm583, %v567, 0
      %v612 = vsel %vm583, %v568, 0
      %v615 = vsel %vm583, %v569, 0
      %v618 = vsel %vm583, %v570, 0
      %v621 = vsel %vm583, %v571, 0
      %v624 = vsel %vm583, %v572, 0
      %v627 = vsel %vm583, %v573, 0
      %v630 = vsel %vm583, %v574, 0
      %632 = vmatpush.msra.mxu0 0.0
      %633 = vmatpush.msra.mxu0 0.0
      %634 = vmatpush.msra.mxu0 0.0
      %635 = vmatpush.msra.mxu0 0.0
      %636 = vmatpush.msra.mxu0 0.0
      %637 = vmatpush.msra.mxu0 0.0
      %638 = vmatpush.msra.mxu0 0.0
      %639 = vmatpush.msra.mxu0 0.0
      %640 = vmatpush.msra.mxu0 0.0
      %641 = vmatpush.msra.mxu0 0.0
      %642 = vmatpush.msra.mxu0 0.0
      %643 = vmatpush.msra.mxu0 0.0
      %644 = vmatpush.msra.mxu0 %v578
      %645 = vmatpush.msra.mxu0 %v577
      %646 = vmatpush.msra.mxu0 %v576
      %647 = vmatpush.msra.mxu0 %v575
      %648 = vmatmul.f32.gmra.mxu0 %v585
      %v649 = vpop.f32.mrf.mxu0
      %v650 = vadd.f32 %v581, %v649
      %651 = vmatmul.f32.gmra.mxu0 %v588
      %v652 = vpop.f32.mrf.mxu0
      %v653 = vadd.f32 %v581, %v652
      %654 = vmatmul.f32.gmra.mxu0 %v591
      %v655 = vpop.f32.mrf.mxu0
      %v656 = vadd.f32 %v581, %v655
      %657 = vmatmul.f32.gmra.mxu0 %v594
      %v658 = vpop.f32.mrf.mxu0
      %v659 = vadd.f32 %v581, %v658
      %660 = vmatmul.f32.gmra.mxu0 %v597
      %v661 = vpop.f32.mrf.mxu0
      %v662 = vadd.f32 %v581, %v661
      %663 = vmatmul.f32.gmra.mxu0 %v600
      %v664 = vpop.f32.mrf.mxu0
      %v665 = vadd.f32 %v581, %v664
      %666 = vmatmul.f32.gmra.mxu0 %v603
      %v667 = vpop.f32.mrf.mxu0
      %v668 = vadd.f32 %v581, %v667
      %669 = vmatmul.f32.gmra.mxu0 %v606
      %v670 = vpop.f32.mrf.mxu0
      %v671 = vadd.f32 %v581, %v670
      %672 = vmatmul.f32.gmra.mxu0 %v609
      %v673 = vpop.f32.mrf.mxu0
      %v674 = vadd.f32 %v581, %v673
      %675 = vmatmul.f32.gmra.mxu0 %v612
      %v676 = vpop.f32.mrf.mxu0
      %v677 = vadd.f32 %v581, %v676
      %678 = vmatmul.f32.gmra.mxu0 %v615
      %v679 = vpop.f32.mrf.mxu0
      %v680 = vadd.f32 %v581, %v679
      %681 = vmatmul.f32.gmra.mxu0 %v618
      %v682 = vpop.f32.mrf.mxu0
      %v683 = vadd.f32 %v581, %v682
      %684 = vmatmul.f32.gmra.mxu0 %v621
      %v685 = vpop.f32.mrf.mxu0
      %v686 = vadd.f32 %v581, %v685
      %687 = vmatmul.f32.gmra.mxu0 %v624
      %v688 = vpop.f32.mrf.mxu0
      %v689 = vadd.f32 %v581, %v688
      %690 = vmatmul.f32.gmra.mxu0 %v627
      %v691 = vpop.f32.mrf.mxu0
      %v692 = vadd.f32 %v581, %v691
      %693 = vmatmul.f32.gmra.mxu0 %v630
      %v694 = vpop.f32.mrf.mxu0
      %v695 = vadd.f32 %v581, %v694
      %696 = vdwg.mxu0
      %v697 = vtanh.pop %v650
      %v698 = vtanh.pop %v653
      %v699 = vtanh.pop %v656
      %v700 = vtanh.pop %v659
      %v701 = vtanh.pop %v662
      %v702 = vtanh.pop %v665
      %v703 = vtanh.pop %v668
      %v704 = vtanh.pop %v671
      %v705 = vtanh.pop %v674
      %v706 = vtanh.pop %v677
      %v707 = vtanh.pop %v680
      %v708 = vtanh.pop %v683
      %v709 = vtanh.pop %v686
      %v710 = vtanh.pop %v689
      %v711 = vtanh.pop %v692
      %v712 = vtanh.pop %v695
      %vm713 = vcmask 15360
      %714 = vst.msk [vmem:[%s280] sm:$0xff] %vm713, %v697
      %715 = vst.msk [vmem:[%s280 + $0x8] sm:$0xff] %vm713, %v698
      %716 = vst.msk [vmem:[%s280 + $0x10] sm:$0xff] %vm713, %v699
      %717 = vst.msk [vmem:[%s280 + $0x18] sm:$0xff] %vm713, %v700
      %718 = vst.msk [vmem:[%s280 + $0x20] sm:$0xff] %vm713, %v701
      %719 = vst.msk [vmem:[%s280 + $0x28] sm:$0xff] %vm713, %v702
      %720 = vst.msk [vmem:[%s280 + $0x30] sm:$0xff] %vm713, %v703
      %721 = vst.msk [vmem:[%s280 + $0x38] sm:$0xff] %vm713, %v704
      %722 = vst.msk [vmem:[%s280 + $0x40] sm:$0xff] %vm713, %v705
      %723 = vst.msk [vmem:[%s280 + $0x48] sm:$0xff] %vm713, %v706
      %724 = vst.msk [vmem:[%s280 + $0x50] sm:$0xff] %vm713, %v707
      %725 = vst.msk [vmem:[%s280 + $0x58] sm:$0xff] %vm713, %v708
      %726 = vst.msk [vmem:[%s280 + $0x60] sm:$0xff] %vm713, %v709
      %727 = vst.msk [vmem:[%s280 + $0x68] sm:$0xff] %vm713, %v710
      %728 = vst.msk [vmem:[%s280 + $0x70] sm:$0xff] %vm713, %v711
      %729 = vst.msk [vmem:[%s280 + $0x78] sm:$0xff] %vm713, %v712
      %s730 = smul.u32 16, %s18
      %p731 = scmp.lt.s32.totalorder %s730, 31
      %s732 = scalar_select %p731, %s730, 31
      %s733 = smul.addr %s732, 8
      %s734 = scalar_lea.vmem %s7, %s733
      // Predicated region
      $region49: #{tpu_custom_call.1} parent=47 // pred_check
        %p735 = pneg %p188
      $region50: #{tpu_custom_call.1} parent=47 // pred_check_branch
        %737 = sbr.rel (%p735) target = $region52
      $region51: #{tpu_custom_call.1} parent=47 // pred_region
        %s738 = smul.u32 16, %s18
      $region52: #{tpu_custom_call.1} parent=47 // pred_fallthru
        _
    $region48: #{tpu_custom_call.1} parent=5 // pred_fallthru
      _
    %p739 = scmp.le.s32.totalorder 2, %s13
    // Predicated region
    $region53: #{tpu_custom_call.1} parent=5 // pred_check
      %p740 = pneg %p739
    $region54: #{tpu_custom_call.1} parent=5 // pred_check_branch
      %742 = sbr.rel (%p740) target = $region56
    $region55: #{tpu_custom_call.1} parent=5 // pred_region
      %s743 = ssub.s32 %s13, 2
      // Predicated region
      $region57: #{tpu_custom_call.1} parent=55 // pred_check
        %p744 = pneg %p194
      $region58: #{tpu_custom_call.1} parent=55 // pred_check_branch
        %746 = sbr.rel (%p744) target = $region60
      $region59: #{tpu_custom_call.1} parent=55 // pred_region
        %s747 = smul.u32 16, %s19
        %p748 = scmp.lt.s32.totalorder %s747, 31
        %s749 = scalar_select %p748, %s747, 31
        %s750 = smul.addr %s749, 8
        %s751 = scalar_lea.vmem %s7, %s750
      $region60: #{tpu_custom_call.1} parent=55 // pred_fallthru
        _
    $region56: #{tpu_custom_call.1} parent=5 // pred_fallthru
      _
  $region6: #{tpu_custom_call.1} parent=0 // loop_footer
    %s17 = sadd.s32 1, %s13
  $region7: #{tpu_custom_call.1} parent=0 // loop_footer_branch
    %12 = sbr.rel target = $region3
  $region8: #{tpu_custom_call.1} parent=0 // loop_exit
    _

</llo_original>
